<compile_context>
chip_gen: v5e
topology: v5e:2x2
jax: 0.10.0
libtpu: 0.0.40
codegen_flags: <defaults>
</compile_context>

<pallas_src>
import math

import jax
import jax.numpy as jnp
from jax.experimental import pallas as pl
from jax.experimental.pallas import tpu as pltpu


def _round_up(n, m):
    return ((n + m - 1) // m) * m


def _d2d_kernel(x_ref, w1_ref, b1_ref, w2_ref, b2_ref, w3_ref, b3_ref, o_ref):
    # x_ref: (C, TB) -- batch on lanes.
    x = x_ref[...]

    # Layer 1: (F, C) @ (C, TB) + (F, 1) -> LeakyReLU(0.01)
    h = jnp.dot(w1_ref[...], x, preferred_element_type=jnp.float32) + b1_ref[...]
    h = jnp.maximum(h, 0.01 * h)

    # Layer 2: (F, F) @ (F, TB) + (F, 1) -> LeakyReLU(0.01)
    h = jnp.dot(w2_ref[...], h, preferred_element_type=jnp.float32) + b2_ref[...]
    h = jnp.maximum(h, 0.01 * h)

    # Layer 3: (1, F) @ (F, TB) + (1, 1) -> Sigmoid (exp on EUP; exact divide).
    z = jnp.dot(w3_ref[...], h, preferred_element_type=jnp.float32) + b3_ref[...]
    o_ref[...] = 1.0 / (1.0 + jnp.exp(-z))


def d2d_forward_t(x_t, params, *, block_b=32768, min_grid_steps=8):
    """Fast path: x_t is already (C, B) -- batch on the minor axis, no copies.

    Returns sigmoid scores of shape (1, B), float32.
    """
    C, B = x_t.shape
    F = params["w1"].shape[0]

    # Batch tile: multiple of 128 lanes, capped by block_b, and small enough to
    # keep >= min_grid_steps grid steps (pipelining + v7x megacore sharding).
    tb_cap = max(128, (int(block_b) // 128) * 128)
    tb = min(tb_cap, _round_up(pl.cdiv(B, max(1, min_grid_steps)), 128))
    tb = max(tb, 128)
    grid = (pl.cdiv(B, tb),)  # ragged last block handled by Pallas masking

    out = pl.pallas_call(
        _d2d_kernel,
        out_shape=jax.ShapeDtypeStruct((1, B), jnp.float32),
        grid=grid,
        in_specs=[
            pl.BlockSpec((C, tb), lambda i: (0, i)),   # streamed activations
            pl.BlockSpec((F, C), lambda i: (0, 0)),    # weights: VMEM-resident
            pl.BlockSpec((F, 1), lambda i: (0, 0)),
            pl.BlockSpec((F, F), lambda i: (0, 0)),
            pl.BlockSpec((F, 1), lambda i: (0, 0)),
            pl.BlockSpec((1, F), lambda i: (0, 0)),
            pl.BlockSpec((1, 1), lambda i: (0, 0)),
        ],
        out_specs=pl.BlockSpec((1, tb), lambda i: (0, i)),  # lane-dense output
        compiler_params=pltpu.CompilerParams(
            dimension_semantics=("parallel",),
            vmem_limit_bytes=32 * 1024 * 1024,  # covers large TB on v5e too
        ),
    )(x_t, params["w1"], params["b1"], params["w2"], params["b2"],
      params["w3"], params["b3"])

    return out  # (1, B)


def d2d_forward(x, params, *, block_b=32768, min_grid_steps=8):
    """x: (B, channel_dim) float32 (PyTorch layout). Returns (B, 1) float32.

    The only layout plumbing is the x.T below; producers that can emit (C, B)
    directly should call d2d_forward_t and avoid the extra HBM pass.
    """
    B, _ = x.shape
    out = d2d_forward_t(x.T, params, block_b=block_b, min_grid_steps=min_grid_steps)
    # (1, B) -> (B, 1): same row-major linearization, so this reshape is free.
    return out.reshape(B, 1)


def init_params(key, channel_dim, feature_dim):
    """Deterministic init mimicking nn.Linear defaults, PyTorch (out, in) layout."""
    ks = jax.random.split(key, 6)

    def linear(kw, kb, fan_in, fan_out):
        bound = 1.0 / math.sqrt(fan_in)
        w = jax.random.uniform(kw, (fan_out, fan_in), jnp.float32, -bound, bound)
        b = jax.random.uniform(kb, (fan_out, 1), jnp.float32, -bound, bound)
        return w, b

    w1, b1 = linear(ks[0], ks[1], channel_dim, feature_dim)
    w2, b2 = linear(ks[2], ks[3], feature_dim, feature_dim)
    w3, b3 = linear(ks[4], ks[5], feature_dim, 1)
    return {"w1": w1, "b1": b1, "w2": w2, "b2": b2, "w3": w3, "b3": b3}


def reference_forward(x, p):
    h = x @ p["w1"].T + p["b1"].T
    h = jnp.where(h > 0, h, 0.01 * h)
    h = h @ p["w2"].T + p["b2"].T
    h = jnp.where(h > 0, h, 0.01 * h)
    h = h @ p["w3"].T + p["b3"].T
    return jax.nn.sigmoid(h)


if __name__ == "__main__":
    key = jax.random.PRNGKey(0)
    k_x, k_p = jax.random.split(key)

    # Small demo shapes. B=300 with the default tile logic gives tb=128 and a
    # 3-step grid, exercising both the multi-step pipeline and the ragged
    # (unpadded) last block. Production batches get tb up to 32768 lanes.
    batch, channel_dim, feature_dim = 300, 4, 32
    x = jax.random.normal(k_x, (batch, channel_dim), jnp.float32)
    params = init_params(k_p, channel_dim, feature_dim)

    out = d2d_forward(x, params)
    out = jax.block_until_ready(out)

    ref = reference_forward(x, params)
    assert out.shape == (batch, 1)
    assert jnp.allclose(out, ref, atol=1e-4, rtol=1e-4)

    print("KERNEL_OK")
</pallas_src>

<mosaic_0001>
module attributes {stable_mosaic.version = 11 : i64} {
  func.func @_d2d_kernel(%arg0: i32, %arg1: memref<4x128xf32, #tpu.memory_space<vmem>>, %arg2: memref<32x4xf32, #tpu.memory_space<vmem>>, %arg3: memref<32x1xf32, #tpu.memory_space<vmem>>, %arg4: memref<32x32xf32, #tpu.memory_space<vmem>>, %arg5: memref<32x1xf32, #tpu.memory_space<vmem>>, %arg6: memref<1x32xf32, #tpu.memory_space<vmem>>, %arg7: memref<1x1xf32, #tpu.memory_space<vmem>>, %arg8: memref<1x128xf32, #tpu.memory_space<vmem>>) attributes {dimension_semantics = [#tpu.dimension_semantics<parallel>], iteration_bounds = array<i64: 3>, scalar_prefetch = 0 : i64, scratch_operands = 0 : i64, tpu.core_type = #tpu.core_type<tc>, window_params = [{transform_indices = @transform_0, window_bounds = array<i64: 4, 128>}, {pipeline_mode = #tpu.pipeline_mode<synchronous>, transform_indices = @transform_1, window_bounds = array<i64: 32, 4>}, {pipeline_mode = #tpu.pipeline_mode<synchronous>, transform_indices = @transform_2, window_bounds = array<i64: 32, 1>}, {pipeline_mode = #tpu.pipeline_mode<synchronous>, transform_indices = @transform_3, window_bounds = array<i64: 32, 32>}, {pipeline_mode = #tpu.pipeline_mode<synchronous>, transform_indices = @transform_4, window_bounds = array<i64: 32, 1>}, {pipeline_mode = #tpu.pipeline_mode<synchronous>, transform_indices = @transform_5, window_bounds = array<i64: 1, 32>}, {pipeline_mode = #tpu.pipeline_mode<synchronous>, transform_indices = @transform_6, window_bounds = array<i64: 1, 1>}, {transform_indices = @transform_7, window_bounds = array<i64: 1, 128>}]} {
    %c0 = arith.constant 0 : index
    %c0_0 = arith.constant 0 : index
    %0 = vector.load %arg1[%c0, %c0_0] : memref<4x128xf32, #tpu.memory_space<vmem>>, vector<4x128xf32>
    %c0_1 = arith.constant 0 : index
    %c0_2 = arith.constant 0 : index
    %1 = vector.load %arg2[%c0_1, %c0_2] : memref<32x4xf32, #tpu.memory_space<vmem>>, vector<32x4xf32>
    %cst = arith.constant dense<0.000000e+00> : vector<32x128xf32>
    %2 = tpu.matmul %1, %0, %cst {dimension_numbers = #tpu.dot_dimension_numbers<[1], [0], [0], [1], [0, 0, 1, 1], [], []>} : vector<32x4xf32>, vector<4x128xf32>, vector<32x128xf32> -> vector<32x128xf32>
    %c0_3 = arith.constant 0 : index
    %c0_4 = arith.constant 0 : index
    %3 = vector.load %arg3[%c0_3, %c0_4] : memref<32x1xf32, #tpu.memory_space<vmem>>, vector<32x1xf32>
    %4 = vector.broadcast %3 : vector<32x1xf32> to vector<32x128xf32>
    %5 = arith.addf %2, %4 : vector<32x128xf32>
    %cst_5 = arith.constant 0.00999999977 : f32
    %6 = vector.broadcast %cst_5 : f32 to vector<32x128xf32>
    %7 = arith.mulf %6, %5 : vector<32x128xf32>
    %8 = arith.maximumf %5, %7 : vector<32x128xf32>
    %c0_6 = arith.constant 0 : index
    %c0_7 = arith.constant 0 : index
    %9 = vector.load %arg4[%c0_6, %c0_7] : memref<32x32xf32, #tpu.memory_space<vmem>>, vector<32x32xf32>
    %cst_8 = arith.constant dense<0.000000e+00> : vector<32x128xf32>
    %10 = tpu.matmul %9, %8, %cst_8 {dimension_numbers = #tpu.dot_dimension_numbers<[1], [0], [0], [1], [0, 0, 1, 1], [], []>} : vector<32x32xf32>, vector<32x128xf32>, vector<32x128xf32> -> vector<32x128xf32>
    %c0_9 = arith.constant 0 : index
    %c0_10 = arith.constant 0 : index
    %11 = vector.load %arg5[%c0_9, %c0_10] : memref<32x1xf32, #tpu.memory_space<vmem>>, vector<32x1xf32>
    %12 = vector.broadcast %11 : vector<32x1xf32> to vector<32x128xf32>
    %13 = arith.addf %10, %12 : vector<32x128xf32>
    %cst_11 = arith.constant 0.00999999977 : f32
    %14 = vector.broadcast %cst_11 : f32 to vector<32x128xf32>
    %15 = arith.mulf %14, %13 : vector<32x128xf32>
    %16 = arith.maximumf %13, %15 : vector<32x128xf32>
    %c0_12 = arith.constant 0 : index
    %c0_13 = arith.constant 0 : index
    %17 = vector.load %arg6[%c0_12, %c0_13] : memref<1x32xf32, #tpu.memory_space<vmem>>, vector<1x32xf32>
    %cst_14 = arith.constant dense<0.000000e+00> : vector<1x128xf32>
    %18 = tpu.matmul %17, %16, %cst_14 {dimension_numbers = #tpu.dot_dimension_numbers<[1], [0], [0], [1], [0, 0, 1, 1], [], []>} : vector<1x32xf32>, vector<32x128xf32>, vector<1x128xf32> -> vector<1x128xf32>
    %c0_15 = arith.constant 0 : index
    %c0_16 = arith.constant 0 : index
    %19 = vector.load %arg7[%c0_15, %c0_16] : memref<1x1xf32, #tpu.memory_space<vmem>>, vector<1x1xf32>
    %20 = vector.broadcast %19 : vector<1x1xf32> to vector<1x128xf32>
    %21 = arith.addf %18, %20 : vector<1x128xf32>
    %cst_17 = arith.constant 0.000000e+00 : f32
    %22 = vector.broadcast %cst_17 : f32 to vector<1x128xf32>
    %23 = arith.subf %22, %21 : vector<1x128xf32>
    %24 = math.exp %23 : vector<1x128xf32>
    %cst_18 = arith.constant 1.000000e+00 : f32
    %25 = vector.broadcast %cst_18 : f32 to vector<1x128xf32>
    %26 = arith.addf %25, %24 : vector<1x128xf32>
    %cst_19 = arith.constant 1.000000e+00 : f32
    %27 = vector.broadcast %cst_19 : f32 to vector<1x128xf32>
    %28 = arith.divf %27, %26 : vector<1x128xf32>
    %c0_20 = arith.constant 0 : index
    %c0_21 = arith.constant 0 : index
    %29 = vector.load %arg8[%c0_20, %c0_21] : memref<1x128xf32, #tpu.memory_space<vmem>>, vector<1x128xf32>
    tpu.vector_store %arg8[%c0_20, %c0_21], %28 {strides = array<i32>} : memref<1x128xf32, #tpu.memory_space<vmem>>, vector<1x128xf32>,
    return
  }
  func.func @transform_0(%arg0: i32) -> (i32, i32) {
    %c0_i32 = arith.constant 0 : i32
    %c0_i32_0 = arith.constant 0 : i32
    return %c0_i32, %arg0 : i32, i32
  }
  func.func @transform_1(%arg0: i32) -> (i32, i32) {
    %c0_i32 = arith.constant 0 : i32
    %c0_i32_0 = arith.constant 0 : i32
    %c0_i32_1 = arith.constant 0 : i32
    return %c0_i32, %c0_i32_0 : i32, i32
  }
  func.func @transform_2(%arg0: i32) -> (i32, i32) {
    %c0_i32 = arith.constant 0 : i32
    %c0_i32_0 = arith.constant 0 : i32
    %c0_i32_1 = arith.constant 0 : i32
    return %c0_i32, %c0_i32_0 : i32, i32
  }
  func.func @transform_3(%arg0: i32) -> (i32, i32) {
    %c0_i32 = arith.constant 0 : i32
    %c0_i32_0 = arith.constant 0 : i32
    %c0_i32_1 = arith.constant 0 : i32
    return %c0_i32, %c0_i32_0 : i32, i32
  }
  func.func @transform_4(%arg0: i32) -> (i32, i32) {
    %c0_i32 = arith.constant 0 : i32
    %c0_i32_0 = arith.constant 0 : i32
    %c0_i32_1 = arith.constant 0 : i32
    return %c0_i32, %c0_i32_0 : i32, i32
  }
  func.func @transform_5(%arg0: i32) -> (i32, i32) {
    %c0_i32 = arith.constant 0 : i32
    %c0_i32_0 = arith.constant 0 : i32
    %c0_i32_1 = arith.constant 0 : i32
    return %c0_i32, %c0_i32_0 : i32, i32
  }
  func.func @transform_6(%arg0: i32) -> (i32, i32) {
    %c0_i32 = arith.constant 0 : i32
    %c0_i32_0 = arith.constant 0 : i32
    %c0_i32_1 = arith.constant 0 : i32
    return %c0_i32, %c0_i32_0 : i32, i32
  }
  func.func @transform_7(%arg0: i32) -> (i32, i32) {
    %c0_i32 = arith.constant 0 : i32
    %c0_i32_0 = arith.constant 0 : i32
    return %c0_i32, %arg0 : i32, i32
  }
}

</mosaic_0001>

<llo_original>
// kernel: tpu_custom_call.1
$region0: #{tpu_custom_call.1}
  #allocation0 [shape = 'u32[]', space=smem, size = 0x4, offset = 0x4, fixed_abs, tag = 'smem constant byte address 0x4 - core index']
  #allocation1 [shape = 'u32[72,128]{1,0:T(1,128)}', space=vmem, size = 0x9000, scoped, tag = 'internal scratch']
  #allocation2 [shape = 'f32[1,1]{1,0:T(1,128)S(1)}', space=vmem, size = 0x200, scoped, tag = 'scoped memory for tpu_custom_call.1']
  %s0 = inlined_call_operand.vmem [shape: f32[4,300], index: 0, kind: input, shape index: {}]
  %s1 = inlined_call_operand.vmem [shape: f32[32,4], index: 1, kind: input, shape index: {}]
  %s2 = inlined_call_operand.vmem [shape: f32[32,1], index: 2, kind: input, shape index: {}]
  %s3 = inlined_call_operand.vmem [shape: f32[32,32], index: 3, kind: input, shape index: {}]
  %s4 = inlined_call_operand.vmem [shape: f32[32,1], index: 4, kind: input, shape index: {}]
  %s5 = inlined_call_operand.vmem [shape: f32[1,32], index: 5, kind: input, shape index: {}]
  %s6 = inlined_call_operand.<no memory space> [shape: f32[1,1], index: 6, kind: input, shape index: {}]
  %s7 = inlined_call_operand.hbm [shape: f32[1,300], index: 7, kind: output, shape index: {}]
  %s8 = sld [smem:[#allocation0]]
  $region61: #{tpu_custom_call.1} parent=0
    _
  %s10 = ssub.s32 1, %s8
  %s11 = scalar_select 0, %s10, %s8
  %v12 = vstv %s6
  %13 = vst [vmem:[#allocation2] sm:$0x1] %v12
  $region1: #{tpu_custom_call.1} parent=0
    #allocation3 [shape = 'u8[1024]{0}', space=vmem, size = 0x400, scoped, tag = 'output window, operand 0']
    #allocation4 [shape = 's32[2]{0}', space=sflag, size = 0x8, scoped, tag = 'scoped memory for tpu_custom_call.1']
    %14 = vsyncpa [#allocation4], 0
    %s15 = scalar_lea.sflag [#allocation4], 1
    %16 = vsyncpa %s15, 0
    loop: start=0, step=1, limit=5
    $region2: #{tpu_custom_call.1} parent=1 // loop_pre_header
      _
    $region3: #{tpu_custom_call.1} parent=1 // loop_header
      %s18 = sphi 0, %s22
      %p19 = scmp.ge.s32.totalorder %s18, 5
      %s28 = sphi 0, %s30
      %s31 = sphi 0, %s28
      %s32 = sphi 0, %s31
      %s48 = sphi 0, %s32
      %s52 = sphi 0, %s52
      %s54 = sphi 0, %s52
      %s55 = sphi 0, %s54
      %s69 = sphi 0, %s55
      %s73 = sphi 0, %s73
      %s75 = sphi 0, %s73
      %s76 = sphi 0, %s75
      %s90 = sphi 0, %s76
      %s94 = sphi 0, %s94
      %s96 = sphi 0, %s94
      %s97 = sphi 0, %s96
      %s111 = sphi 0, %s97
      %s115 = sphi 0, %s115
      %s117 = sphi 0, %s115
      %s118 = sphi 0, %s117
      %s132 = sphi 0, %s118
      %s136 = sphi 0, %s136
      %s138 = sphi 0, %s136
      %s139 = sphi 0, %s138
      %s153 = sphi 0, %s139
      %s157 = sphi 0, %s157
      %s159 = sphi 0, %s157
      %s160 = sphi 0, %s159
      %s174 = sphi 0, %s160
      %s180 = sphi 0, %s182
      %s183 = sphi 0, %s180
      %s184 = sphi 0, %s183
      %s200 = sphi 0, %s184
    $region4: #{tpu_custom_call.1} parent=1 // loop_header_branch
      %21 = sbr.rel (%p19) target = $region8
    $region5: #{tpu_custom_call.1} parent=1 // loop_body
      %s23 = ssub.s32 %s18, 1
      %s24 = ssub.s32 %s18, 2
      %s25 = sadd.s32 %s18, 1
      %s26 = ssub.s32 %s18, %s25
      %p27 = scmp.eq.s32.totalorder %s26, 0
      %s29 = sadd.s32 %s28, 1
      %s30 = scalar_select %p27, %s28, %s29
      %p33 = pneg %p27
      %p34 = scmp.eq.s32.totalorder %s18, 2
      %p35 = por %p33, %p34
      %p36 = scmp.ne.s32.totalorder %s28, %s31
      %p37 = scmp.eq.s32.totalorder %s18, 0
      %p38 = por %p36, %p37
      %p39 = scmp.ne.s32.totalorder %s28, %s31
      %p40 = scmp.eq.s32.totalorder %s23, 2
      %p41 = por %p39, %p40
      %p42 = scmp.ne.s32.totalorder %s31, %s32
      %p43 = scmp.eq.s32.totalorder %s23, 0
      %p44 = por %p42, %p43
      %p45 = scmp.ne.s32.totalorder %s31, %s32
      %p46 = scmp.eq.s32.totalorder %s24, 2
      %p47 = por %p45, %p46
      %p49 = scmp.ne.s32.totalorder %s32, %s48
      %p50 = scmp.eq.s32.totalorder %s24, 0
      %p51 = por %p49, %p50
      %s53 = sadd.s32 %s52, 1
      %p56 = scmp.eq.s32.totalorder %s18, 2
      %p57 = scmp.ne.s32.totalorder %s52, %s54
      %p58 = scmp.eq.s32.totalorder %s18, 0
      %p59 = por %p57, %p58
      %p60 = scmp.ne.s32.totalorder %s52, %s54
      %p61 = scmp.eq.s32.totalorder %s23, 2
      %p62 = por %p60, %p61
      %p63 = scmp.ne.s32.totalorder %s54, %s55
      %p64 = scmp.eq.s32.totalorder %s23, 0
      %p65 = por %p63, %p64
      %p66 = scmp.ne.s32.totalorder %s54, %s55
      %p67 = scmp.eq.s32.totalorder %s24, 2
      %p68 = por %p66, %p67
      %p70 = scmp.ne.s32.totalorder %s55, %s69
      %p71 = scmp.eq.s32.totalorder %s24, 0
      %p72 = por %p70, %p71
      %s74 = sadd.s32 %s73, 1
      %p77 = scmp.eq.s32.totalorder %s18, 2
      %p78 = scmp.ne.s32.totalorder %s73, %s75
      %p79 = scmp.eq.s32.totalorder %s18, 0
      %p80 = por %p78, %p79
      %p81 = scmp.ne.s32.totalorder %s73, %s75
      %p82 = scmp.eq.s32.totalorder %s23, 2
      %p83 = por %p81, %p82
      %p84 = scmp.ne.s32.totalorder %s75, %s76
      %p85 = scmp.eq.s32.totalorder %s23, 0
      %p86 = por %p84, %p85
      %p87 = scmp.ne.s32.totalorder %s75, %s76
      %p88 = scmp.eq.s32.totalorder %s24, 2
      %p89 = por %p87, %p88
      %p91 = scmp.ne.s32.totalorder %s76, %s90
      %p92 = scmp.eq.s32.totalorder %s24, 0
      %p93 = por %p91, %p92
      %s95 = sadd.s32 %s94, 1
      %p98 = scmp.eq.s32.totalorder %s18, 2
      %p99 = scmp.ne.s32.totalorder %s94, %s96
      %p100 = scmp.eq.s32.totalorder %s18, 0
      %p101 = por %p99, %p100
      %p102 = scmp.ne.s32.totalorder %s94, %s96
      %p103 = scmp.eq.s32.totalorder %s23, 2
      %p104 = por %p102, %p103
      %p105 = scmp.ne.s32.totalorder %s96, %s97
      %p106 = scmp.eq.s32.totalorder %s23, 0
      %p107 = por %p105, %p106
      %p108 = scmp.ne.s32.totalorder %s96, %s97
      %p109 = scmp.eq.s32.totalorder %s24, 2
      %p110 = por %p108, %p109
      %p112 = scmp.ne.s32.totalorder %s97, %s111
      %p113 = scmp.eq.s32.totalorder %s24, 0
      %p114 = por %p112, %p113
      %s116 = sadd.s32 %s115, 1
      %p119 = scmp.eq.s32.totalorder %s18, 2
      %p120 = scmp.ne.s32.totalorder %s115, %s117
      %p121 = scmp.eq.s32.totalorder %s18, 0
      %p122 = por %p120, %p121
      %p123 = scmp.ne.s32.totalorder %s115, %s117
      %p124 = scmp.eq.s32.totalorder %s23, 2
      %p125 = por %p123, %p124
      %p126 = scmp.ne.s32.totalorder %s117, %s118
      %p127 = scmp.eq.s32.totalorder %s23, 0
      %p128 = por %p126, %p127
      %p129 = scmp.ne.s32.totalorder %s117, %s118
      %p130 = scmp.eq.s32.totalorder %s24, 2
      %p131 = por %p129, %p130
      %p133 = scmp.ne.s32.totalorder %s118, %s132
      %p134 = scmp.eq.s32.totalorder %s24, 0
      %p135 = por %p133, %p134
      %s137 = sadd.s32 %s136, 1
      %p140 = scmp.eq.s32.totalorder %s18, 2
      %p141 = scmp.ne.s32.totalorder %s136, %s138
      %p142 = scmp.eq.s32.totalorder %s18, 0
      %p143 = por %p141, %p142
      %p144 = scmp.ne.s32.totalorder %s136, %s138
      %p145 = scmp.eq.s32.totalorder %s23, 2
      %p146 = por %p144, %p145
      %p147 = scmp.ne.s32.totalorder %s138, %s139
      %p148 = scmp.eq.s32.totalorder %s23, 0
      %p149 = por %p147, %p148
      %p150 = scmp.ne.s32.totalorder %s138, %s139
      %p151 = scmp.eq.s32.totalorder %s24, 2
      %p152 = por %p150, %p151
      %p154 = scmp.ne.s32.totalorder %s139, %s153
      %p155 = scmp.eq.s32.totalorder %s24, 0
      %p156 = por %p154, %p155
      %s158 = sadd.s32 %s157, 1
      %p161 = scmp.eq.s32.totalorder %s18, 2
      %p162 = scmp.ne.s32.totalorder %s157, %s159
      %p163 = scmp.eq.s32.totalorder %s18, 0
      %p164 = por %p162, %p163
      %p165 = scmp.ne.s32.totalorder %s157, %s159
      %p166 = scmp.eq.s32.totalorder %s23, 2
      %p167 = por %p165, %p166
      %p168 = scmp.ne.s32.totalorder %s159, %s160
      %p169 = scmp.eq.s32.totalorder %s23, 0
      %p170 = por %p168, %p169
      %p171 = scmp.ne.s32.totalorder %s159, %s160
      %p172 = scmp.eq.s32.totalorder %s24, 2
      %p173 = por %p171, %p172
      %p175 = scmp.ne.s32.totalorder %s160, %s174
      %p176 = scmp.eq.s32.totalorder %s24, 0
      %p177 = por %p175, %p176
      %s178 = ssub.s32 %s18, %s25
      %p179 = scmp.eq.s32.totalorder %s178, 0
      %s181 = sadd.s32 %s180, 1
      %s182 = scalar_select %p179, %s180, %s181
      %p185 = pneg %p179
      %p186 = scmp.eq.s32.totalorder %s18, 2
      %p187 = por %p185, %p186
      %p188 = scmp.ne.s32.totalorder %s180, %s183
      %p189 = scmp.eq.s32.totalorder %s18, 0
      %p190 = por %p188, %p189
      %p191 = scmp.ne.s32.totalorder %s180, %s183
      %p192 = scmp.eq.s32.totalorder %s23, 2
      %p193 = por %p191, %p192
      %p194 = scmp.ne.s32.totalorder %s183, %s184
      %p195 = scmp.eq.s32.totalorder %s23, 0
      %p196 = por %p194, %p195
      %p197 = scmp.ne.s32.totalorder %s183, %s184
      %p198 = scmp.eq.s32.totalorder %s24, 2
      %p199 = por %p197, %p198
      %p201 = scmp.ne.s32.totalorder %s184, %s200
      %p202 = scmp.eq.s32.totalorder %s24, 0
      %p203 = por %p201, %p202
      %p204 = scmp.le.s32.totalorder 1, %s18
      %p205 = scmp.lt.s32.totalorder %s18, 4
      %p206 = pnand %p204, %p205
      %p207 = pneg %p206
      // Predicated region
      $region9: #{tpu_custom_call.1} parent=5 // pred_check
        _
      $region10: #{tpu_custom_call.1} parent=5 // pred_check_branch
        %209 = sbr.rel (%p206) target = $region12
      $region11: #{tpu_custom_call.1} parent=5 // pred_region
        %s210 = ssub.s32 %s18, 1
        // Predicated region
        $region13: #{tpu_custom_call.1} parent=11 // pred_check
          %p211 = pneg %p65
        $region14: #{tpu_custom_call.1} parent=11 // pred_check_branch
          %213 = sbr.rel (%p211) target = $region16
        $region15: #{tpu_custom_call.1} parent=11 // pred_region
          _
        $region16: #{tpu_custom_call.1} parent=11 // pred_fallthru
          _
        // Predicated region
        $region17: #{tpu_custom_call.1} parent=11 // pred_check
          %p214 = pneg %p86
        $region18: #{tpu_custom_call.1} parent=11 // pred_check_branch
          %216 = sbr.rel (%p214) target = $region20
        $region19: #{tpu_custom_call.1} parent=11 // pred_region
          _
        $region20: #{tpu_custom_call.1} parent=11 // pred_fallthru
          _
        // Predicated region
        $region21: #{tpu_custom_call.1} parent=11 // pred_check
          %p217 = pneg %p107
        $region22: #{tpu_custom_call.1} parent=11 // pred_check_branch
          %219 = sbr.rel (%p217) target = $region24
        $region23: #{tpu_custom_call.1} parent=11 // pred_region
          _
        $region24: #{tpu_custom_call.1} parent=11 // pred_fallthru
          _
        // Predicated region
        $region25: #{tpu_custom_call.1} parent=11 // pred_check
          %p220 = pneg %p128
        $region26: #{tpu_custom_call.1} parent=11 // pred_check_branch
          %222 = sbr.rel (%p220) target = $region28
        $region27: #{tpu_custom_call.1} parent=11 // pred_region
          _
        $region28: #{tpu_custom_call.1} parent=11 // pred_fallthru
          _
        // Predicated region
        $region29: #{tpu_custom_call.1} parent=11 // pred_check
          %p223 = pneg %p149
        $region30: #{tpu_custom_call.1} parent=11 // pred_check_branch
          %225 = sbr.rel (%p223) target = $region32
        $region31: #{tpu_custom_call.1} parent=11 // pred_region
          _
        $region32: #{tpu_custom_call.1} parent=11 // pred_fallthru
          _
        // Predicated region
        $region33: #{tpu_custom_call.1} parent=11 // pred_check
          %p226 = pneg %p170
        $region34: #{tpu_custom_call.1} parent=11 // pred_check_branch
          %228 = sbr.rel (%p226) target = $region36
        $region35: #{tpu_custom_call.1} parent=11 // pred_region
          _
        $region36: #{tpu_custom_call.1} parent=11 // pred_fallthru
          _
      $region12: #{tpu_custom_call.1} parent=5 // pred_fallthru
        _
      %p229 = scmp.lt.s32.totalorder %s18, 3
      // Predicated region
      $region37: #{tpu_custom_call.1} parent=5 // pred_check
        %p230 = pneg %p229
      $region38: #{tpu_custom_call.1} parent=5 // pred_check_branch
        %232 = sbr.rel (%p230) target = $region40
      $region39: #{tpu_custom_call.1} parent=5 // pred_region
        // Predicated region
        $region41: #{tpu_custom_call.1} parent=39 // pred_check
          %p233 = pneg %p38
        $region42: #{tpu_custom_call.1} parent=39 // pred_check_branch
          %235 = sbr.rel (%p233) target = $region44
        $region43: #{tpu_custom_call.1} parent=39 // pred_region
          %p236 = scmp.lt.s32.totalorder %s18, 2
          %s237 = scalar_select %p236, %s18, 2
          %s238 = smul.addr %s237, 4
          %s239 = scalar_lea.vmem %s0, %s238
        $region44: #{tpu_custom_call.1} parent=39 // pred_fallthru
          _
      $region40: #{tpu_custom_call.1} parent=5 // pred_fallthru
        _
      %p240 = scmp.le.s32.totalorder 1, %s18
      %p241 = scmp.lt.s32.totalorder %s18, 4
      %p242 = pnand %p240, %p241
      %p243 = pneg %p242
      // Predicated region
      $region45: #{tpu_custom_call.1} parent=5 // pred_check
        _
      $region46: #{tpu_custom_call.1} parent=5 // pred_check_branch
        %245 = sbr.rel (%p242) target = $region48
      $region47: #{tpu_custom_call.1} parent=5 // pred_region
        %s246 = ssub.s32 %s18, 1
        %p247 = scmp.lt.s32.totalorder %s23, 2
        %s248 = scalar_select %p247, %s23, 2
        %s249 = smul.addr %s248, 4
        %s250 = scalar_lea.vmem %s0, %s249
        %p251 = pneg %p44
        %p252 = pneg %p41
        %p253 = pneg %p65
        %p254 = pneg %p62
        %p255 = pneg %p86
        %p256 = pneg %p83
        %p257 = pneg %p107
        %p258 = pneg %p104
        %p259 = pneg %p128
        %p260 = pneg %p125
        %p261 = pneg %p149
        %p262 = pneg %p146
        %p263 = pneg %p170
        %p264 = pneg %p167
        %p265 = pneg %p196
        %p266 = pneg %p193
        %s267 = sand.u32 %s183, 1
        %s268 = scalar_lea.sflag [#allocation4], %s267
        %s269 = sand.u32 %s183, 1
        %s270 = scalar_lea.vmem [#allocation3], %s269
        %p271 = scmp.lt.s32.totalorder %s23, 2
        %s272 = scalar_select %p271, %s23, 2
        %s273 = smul.addr %s272, 4
        %s274 = scalar_lea.vmem %s0, %s273
        %v275 = vld [vmem:[%s274] sm:$0xf]
        %v276 = vld [vmem:[%s1] sm:$0xff]
        %v277 = vld [vmem:[%s1 + $0x8] sm:$0xff]
        %v278 = vld [vmem:[%s1 + $0x10] sm:$0xff]
        %v279 = vld [vmem:[%s1 + $0x18] sm:$0xff]
        %v280 = vld [vmem:[%s2] sm:$0xff]
        %v281 = vld [vmem:[%s2 + $0x8] sm:$0xff]
        %v282 = vld [vmem:[%s2 + $0x10] sm:$0xff]
        %v283 = vld [vmem:[%s2 + $0x18] sm:$0xff]
        %285 = vset.pattern.permute.xlu0 0
        %286 = vperm.xlu0 %285, %v280
        %v287 = vpop.permute.xlu0 %286
        %290 = vset.pattern.permute.xlu0 0
        %291 = vperm.xlu0 %290, %v281
        %v292 = vpop.permute.xlu0 %291
        %295 = vset.pattern.permute.xlu0 0
        %296 = vperm.xlu0 %295, %v282
        %v297 = vpop.permute.xlu0 %296
        %300 = vset.pattern.permute.xlu0 0
        %301 = vperm.xlu0 %300, %v283
        %v302 = vpop.permute.xlu0 %301
        %vm304 = vcmask 31744
        %v306 = vsel %vm304, %v276, 0
        %v309 = vsel %vm304, %v277, 0
        %v312 = vsel %vm304, %v278, 0
        %v315 = vsel %vm304, %v279, 0
        %vm317 = vcmask 1043456
        %v319 = vsel %vm317, %v275, 0
        %321 = vmatpush.msra.mxu0 0.0
        %322 = vmatpush.msra.mxu0 0.0
        %323 = vmatpush.msra.mxu0 0.0
        %324 = vmatpush.msra.mxu0 0.0
        %325 = vmatpush.msra.mxu0 0.0
        %326 = vmatpush.msra.mxu0 0.0
        %327 = vmatpush.msra.mxu0 0.0
        %328 = vmatpush.msra.mxu0 0.0
        %329 = vmatpush.msra.mxu0 0.0
        %330 = vmatpush.msra.mxu0 0.0
        %331 = vmatpush.msra.mxu0 0.0
        %332 = vmatpush.msra.mxu0 0.0
        %333 = vmatpush.msra.mxu0 0.0
        %334 = vmatpush.msra.mxu0 0.0
        %335 = vmatpush.msra.mxu0 0.0
        %336 = vmatpush.msra.mxu0 %v319
        %337 = vmatmul.f32.gmra.mxu0 %v306
        %v338 = vpop.f32.mrf.mxu0
        %v339 = vadd.f32 %v287, %v338
        %340 = vmatmul.f32.gmra.mxu0 %v309
        %v341 = vpop.f32.mrf.mxu0
        %v342 = vadd.f32 %v292, %v341
        %343 = vmatmul.f32.gmra.mxu0 %v312
        %v344 = vpop.f32.mrf.mxu0
        %v345 = vadd.f32 %v297, %v344
        %346 = vmatmul.f32.gmra.mxu0 %v315
        %v347 = vpop.f32.mrf.mxu0
        %v348 = vadd.f32 %v302, %v347
        %349 = vdwg.mxu0
        %v350 = vmul.f32 %v339, 0.01
        %v351 = vmul.f32 %v342, 0.01
        %v352 = vmul.f32 %v345, 0.01
        %v353 = vmul.f32 %v348, 0.01
        %v354 = vmax.f32 %v339, %v350
        %v355 = vmax.f32 %v342, %v351
        %v356 = vmax.f32 %v345, %v352
        %v357 = vmax.f32 %v348, %v353
        %v358 = vld [vmem:[%s3] sm:$0xff]
        %v359 = vld [vmem:[%s3 + $0x8] sm:$0xff]
        %v360 = vld [vmem:[%s3 + $0x10] sm:$0xff]
        %v361 = vld [vmem:[%s3 + $0x18] sm:$0xff]
        %v362 = vld [vmem:[%s4] sm:$0xff]
        %v363 = vld [vmem:[%s4 + $0x8] sm:$0xff]
        %v364 = vld [vmem:[%s4 + $0x10] sm:$0xff]
        %v365 = vld [vmem:[%s4 + $0x18] sm:$0xff]
        %367 = vset.pattern.permute.xlu0 0
        %368 = vperm.xlu0 %367, %v362
        %v369 = vpop.permute.xlu0 %368
        %372 = vset.pattern.permute.xlu0 0
        %373 = vperm.xlu0 %372, %v363
        %v374 = vpop.permute.xlu0 %373
        %377 = vset.pattern.permute.xlu0 0
        %378 = vperm.xlu0 %377, %v364
        %v379 = vpop.permute.xlu0 %378
        %382 = vset.pattern.permute.xlu0 0
        %383 = vperm.xlu0 %382, %v365
        %v384 = vpop.permute.xlu0 %383
        %vm386 = vcmask 261120
        %v388 = vsel %vm386, %v358, 0
        %v391 = vsel %vm386, %v359, 0
        %v394 = vsel %vm386, %v360, 0
        %v397 = vsel %vm386, %v361, 0
        %399 = vmatpush.msra.mxu0 0.0
        %400 = vmatpush.msra.mxu0 0.0
        %401 = vmatpush.msra.mxu0 0.0
        %402 = vmatpush.msra.mxu0 0.0
        %403 = vmatpush.msra.mxu0 0.0
        %404 = vmatpush.msra.mxu0 0.0
        %405 = vmatpush.msra.mxu0 0.0
        %406 = vmatpush.msra.mxu0 0.0
        %407 = vmatpush.msra.mxu0 0.0
        %408 = vmatpush.msra.mxu0 0.0
        %409 = vmatpush.msra.mxu0 0.0
        %410 = vmatpush.msra.mxu0 0.0
        %411 = vmatpush.msra.mxu0 %v357
        %412 = vmatpush.msra.mxu0 %v356
        %413 = vmatpush.msra.mxu0 %v355
        %414 = vmatpush.msra.mxu0 %v354
        %415 = vmatmul.f32.gmra.mxu0 %v388
        %v416 = vpop.f32.mrf.mxu0
        %v417 = vadd.f32 %v369, %v416
        %418 = vmatmul.f32.gmra.mxu0 %v391
        %v419 = vpop.f32.mrf.mxu0
        %v420 = vadd.f32 %v374, %v419
        %421 = vmatmul.f32.gmra.mxu0 %v394
        %v422 = vpop.f32.mrf.mxu0
        %v423 = vadd.f32 %v379, %v422
        %424 = vmatmul.f32.gmra.mxu0 %v397
        %v425 = vpop.f32.mrf.mxu0
        %v426 = vadd.f32 %v384, %v425
        %427 = vdwg.mxu0
        %v428 = vmul.f32 %v417, 0.01
        %v429 = vmul.f32 %v420, 0.01
        %v430 = vmul.f32 %v423, 0.01
        %v431 = vmul.f32 %v426, 0.01
        %v432 = vmax.f32 %v417, %v428
        %v433 = vmax.f32 %v420, %v429
        %v434 = vmax.f32 %v423, %v430
        %v435 = vmax.f32 %v426, %v431
        %v436 = vld [vmem:[%s5] sm:$0x1]
        %v437 = vld [vmem:[#allocation2] sm:$0x1]
        %439 = vset.pattern.permute.xlu0 0
        %440 = vperm.xlu0 %439, %v437
        %v441 = vpop.permute.xlu0 %440
        %v443 = vperm.slane %v441, 0
        %v445 = vsel %vm386, %v436, 0
        %447 = vmatpush.msra.mxu0 0.0
        %448 = vmatpush.msra.mxu0 0.0
        %449 = vmatpush.msra.mxu0 0.0
        %450 = vmatpush.msra.mxu0 0.0
        %451 = vmatpush.msra.mxu0 0.0
        %452 = vmatpush.msra.mxu0 0.0
        %453 = vmatpush.msra.mxu0 0.0
        %454 = vmatpush.msra.mxu0 0.0
        %455 = vmatpush.msra.mxu0 0.0
        %456 = vmatpush.msra.mxu0 0.0
        %457 = vmatpush.msra.mxu0 0.0
        %458 = vmatpush.msra.mxu0 0.0
        %459 = vmatpush.msra.mxu0 %v435
        %460 = vmatpush.msra.mxu0 %v434
        %461 = vmatpush.msra.mxu0 %v433
        %462 = vmatpush.msra.mxu0 %v432
        %463 = vmatmul.f32.gmra.mxu0 %v445
        %v464 = vpop.f32.mrf.mxu0
        %v465 = vadd.f32 %v443, %v464
        %466 = vdwg.mxu0
        %v467 = vsub.f32 0.0, %v465
        %v468 = vmul.f32 %v467, 1.442695
        %v469 = vpow.pop %v468
        %v470 = vadd.f32 %v469, 1.0
        %v471 = vrcp.pop %v470
        %v472 = vmul.f32 %v470, %v471
        %v473 = vsub.f32 1.0, %v472
        %v474 = vmul.f32 %v471, %v473
        %v475 = vadd.f32 %v471, %v474
        %vm476 = vweird.f32 %v470
        %vm477 = vweird.f32 %v471
        %vm478 = vmor %vm476, %vm477
        %v479 = vsel %vm478, %v471, %v475
        %v480 = vand.u32 2147483647, %v470
        %vm481 = vcmp.eq.f32.partialorder %v480, 8.507059e+37
        %v482 = vand.u32 %v470, 2147483648
        %v483 = vor.u32 1.1754944e-38, %v482
        %v484 = vsel %vm481, %v483, %v479
        %v485 = vmul.f32 1.0, %v484
        %486 = vst [vmem:[%s270] sm:$0x1] %v485
        %s487 = sand.u32 %s183, 1
        %s488 = scalar_lea.sflag [#allocation4], %s487
        %s489 = sand.u32 %s183, 1
        %s490 = scalar_lea.vmem [#allocation3], %s489
        // Predicated region
        $region49: #{tpu_custom_call.1} parent=47 // pred_check
          %p491 = pneg %p193
        $region50: #{tpu_custom_call.1} parent=47 // pred_check_branch
          %493 = sbr.rel (%p491) target = $region52
        $region51: #{tpu_custom_call.1} parent=47 // pred_region
          %495 = vsyncadd %s488, 0
          %s496 = scalar_lea.hbm %s7, %s23
          %s498 = sshll.u32 %s490, 4
          %s499 = int_to_ptr.vmem [resolvable:$true] %s498
          %s500 = sshll.u32 %s496, 4
          %s501 = int_to_ptr.hbm [resolvable:$true] %s500
          %503 = dma.vmem_to_hbm [thread:$0]  %s499, 16, %s501, %s488
        $region52: #{tpu_custom_call.1} parent=47 // pred_fallthru
          _
      $region48: #{tpu_custom_call.1} parent=5 // pred_fallthru
        _
      %p504 = scmp.le.s32.totalorder 2, %s18
      // Predicated region
      $region53: #{tpu_custom_call.1} parent=5 // pred_check
        %p505 = pneg %p504
      $region54: #{tpu_custom_call.1} parent=5 // pred_check_branch
        %507 = sbr.rel (%p505) target = $region56
      $region55: #{tpu_custom_call.1} parent=5 // pred_region
        %s508 = ssub.s32 %s18, 2
        // Predicated region
        $region57: #{tpu_custom_call.1} parent=55 // pred_check
          %p509 = pneg %p199
        $region58: #{tpu_custom_call.1} parent=55 // pred_check_branch
          %511 = sbr.rel (%p509) target = $region60
        $region59: #{tpu_custom_call.1} parent=55 // pred_region
          %s512 = sand.u32 %s184, 1
          %s513 = scalar_lea.sflag [#allocation4], %s512
          %s514 = sand.u32 %s184, 1
          %s515 = scalar_lea.vmem [#allocation3], %s514
          %517 = dma.done %s513, 16
        $region60: #{tpu_custom_call.1} parent=55 // pred_fallthru
          _
      $region56: #{tpu_custom_call.1} parent=5 // pred_fallthru
        _
    $region6: #{tpu_custom_call.1} parent=1 // loop_footer
      %s22 = sadd.s32 1, %s18
    $region7: #{tpu_custom_call.1} parent=1 // loop_footer_branch
      %17 = sbr.rel target = $region3
    $region8: #{tpu_custom_call.1} parent=1 // loop_exit
      _
    %518 = vsyncpa [#allocation4], 1
    %s519 = scalar_lea.sflag [#allocation4], 1
    %520 = vsyncpa %s519, 1

</llo_original>
